<compile_context>
chip_gen: v7x
topology: tpu7x:2x2x1
jax: 0.10.0
libtpu: 0.0.40
codegen_flags: <defaults>
</compile_context>

<pallas_src>
import functools
import math

import jax
import jax.numpy as jnp
from jax.experimental import pallas as pl
from jax.experimental.pallas import tpu as pltpu


def _round_up(x, m):
    return (x + m - 1) // m * m


# ----------------------------- recurrent kernel ------------------------------
def _lstm_chunk_kernel(xg_ref, whh_ref, hseq_ref, cfirst_ref, clast_ref,
                       h_sc, c_sc, *, t_block, hidden):
    """Processes one (direction, time-chunk) grid cell.

    xg_ref:    (t_block, B_pad, 4H) f32  precomputed x @ W_ih^T pre-activations
    whh_ref:   (H, 4H)                   pre-transposed recurrent weights
    hseq_ref:  (t_block, B_pad, H) f32   per-step hidden output
    cfirst_ref:(B_pad, H) f32            c after the FIRST processed step
    clast_ref: (B_pad, H) f32            c after the LAST processed step
    h_sc/c_sc: (B_pad, H) f32            state carried across time chunks
    """
    H = hidden
    s = pl.program_id(1)  # time-chunk index (sequential / "arbitrary")

    # Zero-init hidden/cell state at the start of each direction's sequence
    # (matches RNNCell.init_hidden).
    @pl.when(s == 0)
    def _init():
        h_sc[...] = jnp.zeros_like(h_sc)
        c_sc[...] = jnp.zeros_like(c_sc)

    def one_step(t):
        h = h_sc[...]
        gates = xg_ref[t] + jnp.dot(h.astype(whh_ref.dtype), whh_ref[...],
                                    preferred_element_type=jnp.float32)
        i_g = jax.nn.sigmoid(gates[:, 0 * H:1 * H])
        f_g = jax.nn.sigmoid(gates[:, 1 * H:2 * H])
        g_g = jnp.tanh(gates[:, 2 * H:3 * H])
        o_g = jax.nn.sigmoid(gates[:, 3 * H:4 * H])
        c_new = f_g * c_sc[...] + i_g * g_g
        h_new = o_g * jnp.tanh(c_new)
        h_sc[...] = h_new
        c_sc[...] = c_new
        hseq_ref[t] = h_new.astype(hseq_ref.dtype)
        return c_new

    # Peel the chunk's first step so the "reverse direction collects hidden
    # after its first processed step" semantics need no in-loop branch.
    c_after_first = one_step(0)

    @pl.when(s == 0)
    def _store_cfirst():
        cfirst_ref[...] = c_after_first

    if t_block > 1:
        def body(t, carry):
            one_step(t)
            return carry
        jax.lax.fori_loop(1, t_block, body, 0, unroll=True)

    @pl.when(s == pl.num_programs(1) - 1)
    def _store_clast():
        clast_ref[...] = c_sc[...]


# ------------------------------ layer wrapper --------------------------------
def _lstm_layer_bidir(x_dir, wih_t2, whh_t2, *, t_block):
    """One stacked-LSTM layer, both directions fused as a leading grid axis.

    x_dir:  (2, S, B_pad, in)  per-direction inputs in PROCESSING order
    wih_t2: (2, in, 4H)        pre-transposed input weights   (compute dtype)
    whh_t2: (2, H, 4H)         pre-transposed recurrent weights (compute dtype)
    Returns h_seq (2, S, B_pad, H), c_first (2, B_pad, H), c_last (2, B_pad, H),
    all float32, in processing order per direction.
    """
    n_dir, S, B_pad, in_size = x_dir.shape
    H = whh_t2.shape[1]
    assert S % t_block == 0
    n_chunks = S // t_block

    # Hoisted input projection: one batched MXU-shaped matmul over all
    # timesteps and both directions (W_ih never enters the serial recurrence).
    xg = jax.lax.dot_general(
        x_dir.reshape(n_dir, S * B_pad, in_size).astype(wih_t2.dtype),
        wih_t2,
        dimension_numbers=(((2,), (1,)), ((0,), (0,))),
        preferred_element_type=jnp.float32,
    ).reshape(n_dir, S, B_pad, 4 * H)

    kernel = functools.partial(_lstm_chunk_kernel, t_block=t_block, hidden=H)

    # TODO(synk): for realistic sizes (H, in >= 1024) single-buffer the weight
    # block (pipeline_mode=pl.Buffered(1) or a one-time DMA from pl.ANY) and
    # set vmem_limit_bytes to stay under the v7x 64 MiB VMEM ceiling.
    h_seq, c_first, c_last = pl.pallas_call(
        kernel,
        grid=(n_dir, n_chunks),
        in_specs=[
            pl.BlockSpec((None, t_block, B_pad, 4 * H),
                         lambda d, s: (d, s, 0, 0)),
            pl.BlockSpec((None, H, 4 * H), lambda d, s: (d, 0, 0)),
        ],
        out_specs=[
            pl.BlockSpec((None, t_block, B_pad, H),
                         lambda d, s: (d, s, 0, 0)),
            pl.BlockSpec((None, B_pad, H), lambda d, s: (d, 0, 0)),
            pl.BlockSpec((None, B_pad, H), lambda d, s: (d, 0, 0)),
        ],
        out_shape=[
            jax.ShapeDtypeStruct((n_dir, S, B_pad, H), jnp.float32),
            jax.ShapeDtypeStruct((n_dir, B_pad, H), jnp.float32),
            jax.ShapeDtypeStruct((n_dir, B_pad, H), jnp.float32),
        ],
        scratch_shapes=[
            pltpu.VMEM((B_pad, H), jnp.float32),
            pltpu.VMEM((B_pad, H), jnp.float32),
        ],
        compiler_params=pltpu.CompilerParams(
            dimension_semantics=("parallel", "arbitrary")),
    )(xg, whh_t2)
    return h_seq, c_first, c_last


# --------------------------- bidirectional wrapper ----------------------------
def bidirectional_rnn(x_seq, fwd_params, bck_params, *, t_block_max=8,
                      compute_dtype=jnp.float32):
    """Equivalent of bidirectionalRNN.forward(collect_hidden=False)."""
    S, B, _ = x_seq.shape
    H = fwd_params[0][1].shape[1]
    B_pad = _round_up(B, 8)

    # Direction 0: forward (processing order == input order).
    # Direction 1: backward (time-reversed input; kept in processing order
    # between layers, un-reversed only at the very end).
    x_dir = jnp.stack([x_seq, x_seq[::-1]], axis=0)          # (2, S, B, in)
    if B_pad != B:
        x_dir = jnp.pad(x_dir, ((0, 0), (0, 0), (0, B_pad - B), (0, 0)))

    # Largest chunk size that divides S (caps per-chunk VMEM).
    t_block = max(d for d in range(1, min(t_block_max, S) + 1) if S % d == 0)

    out = x_dir
    h_n_layers, c_n_layers = [], []
    for (wih_f, whh_f), (wih_b, whh_b) in zip(fwd_params, bck_params):
        wih_t2 = jnp.stack([wih_f.T, wih_b.T], 0).astype(compute_dtype)
        whh_t2 = jnp.stack([whh_f.T, whh_b.T], 0).astype(compute_dtype)
        h_seq, c_first, c_last = _lstm_layer_bidir(out, wih_t2, whh_t2,
                                                   t_block=t_block)
        out = h_seq  # (2, S, B_pad, H), processing order per direction

        # stackedRNN collects hidden at seq == S-1:
        #   forward -> after its LAST processed step
        #   reverse -> after its FIRST processed step (input index S-1)
        h_n_layers.append(jnp.concatenate(
            [h_seq[0, S - 1, :B], h_seq[1, 0, :B]], axis=-1))
        c_n_layers.append(jnp.concatenate(
            [c_last[0, :B], c_first[1, :B]], axis=-1))

    fwd_out = out[0, :, :B, :]
    bck_out = out[1, ::-1, :B, :]            # back to input-time order
    output = jnp.concatenate([fwd_out, bck_out], axis=-1)    # (S, B, 2H)
    # TODO(synk): the reference code torch.cat's python *lists* of per-layer
    # tensors (which raises); we implement the intended per-layer concat.
    h_n = jnp.stack(h_n_layers, 0)           # (nLayers, B, 2H)
    c_n = jnp.stack(c_n_layers, 0)           # (nLayers, B, 2H)
    return output, (h_n, c_n)


# -------------------- pure-JAX reference for verification --------------------
def _lstm_layer_ref(x_seq, w_ih, w_hh, reverse):
    seq_len, bsz, _ = x_seq.shape
    H = w_hh.shape[1]
    h = jnp.zeros((bsz, H), jnp.float32)
    c = jnp.zeros((bsz, H), jnp.float32)
    hs = [None] * seq_len
    cs = [None] * seq_len
    order = range(seq_len - 1, -1, -1) if reverse else range(seq_len)
    for t in order:
        gates = x_seq[t] @ w_ih.T + h @ w_hh.T
        i, f, g, o = jnp.split(gates, 4, axis=-1)
        c = jax.nn.sigmoid(f) * c + jax.nn.sigmoid(i) * jnp.tanh(g)
        h = jax.nn.sigmoid(o) * jnp.tanh(c)
        hs[t] = h
        cs[t] = c
    return jnp.stack(hs), jnp.stack(cs)


def _bidirectional_ref(x_seq, fwd_params, bck_params):
    def stack(params, reverse):
        seq_len = x_seq.shape[0]
        out = x_seq
        hl, cl = [], []
        for (w_ih, w_hh) in params:
            hseq, cseq = _lstm_layer_ref(out, w_ih, w_hh, reverse)
            out = hseq
            hl.append(hseq[seq_len - 1])
            cl.append(cseq[seq_len - 1])
        return out, jnp.stack(hl, 0), jnp.stack(cl, 0)

    fo, fh, fc = stack(fwd_params, False)
    bo, bh, bc = stack(bck_params, True)
    return (jnp.concatenate([fo, bo], -1),
            jnp.concatenate([fh, bh], -1),
            jnp.concatenate([fc, bc], -1))


# ------------------------------ parameter init --------------------------------
def init_cell_params(key, input_size, hidden_size):
    # RNNCell.reset_parameters: uniform(-1/sqrt(H), 1/sqrt(H)), bias=False.
    stdv = 1.0 / math.sqrt(hidden_size)
    k1, k2 = jax.random.split(key)
    w_ih = jax.random.uniform(k1, (4 * hidden_size, input_size),
                              jnp.float32, -stdv, stdv)
    w_hh = jax.random.uniform(k2, (4 * hidden_size, hidden_size),
                              jnp.float32, -stdv, stdv)
    return w_ih, w_hh


if __name__ == "__main__":
    seq_len, bsz, in_size, hidden, num_layers = 8, 4, 16, 32, 2

    key = jax.random.PRNGKey(0)
    k_x, k_p = jax.random.split(key)
    x = jax.random.normal(k_x, (seq_len, bsz, in_size), jnp.float32)

    keys = jax.random.split(k_p, 2 * num_layers)
    fwd_params, bck_params = [], []
    for l in range(num_layers):
        isz = in_size if l == 0 else hidden
        fwd_params.append(init_cell_params(keys[l], isz, hidden))
        bck_params.append(init_cell_params(keys[num_layers + l], isz, hidden))

    ref_out, ref_h, ref_c = _bidirectional_ref(x, fwd_params, bck_params)

    # f32 matmuls, chunked time grid (t_block=4 -> grid (2, 2)).
    run_f32 = jax.jit(functools.partial(
        bidirectional_rnn, t_block_max=4, compute_dtype=jnp.float32))
    output, (h_n, c_n) = run_f32(x, fwd_params, bck_params)
    jax.block_until_ready((output, h_n, c_n))

    assert output.shape == (seq_len, bsz, 2 * hidden)
    assert h_n.shape == (num_layers, bsz, 2 * hidden)
    assert c_n.shape == (num_layers, bsz, 2 * hidden)
    assert jnp.allclose(output, ref_out, atol=1e-4, rtol=1e-4)
    assert jnp.allclose(h_n, ref_h, atol=1e-4, rtol=1e-4)
    assert jnp.allclose(c_n, ref_c, atol=1e-4, rtol=1e-4)

    # bf16 matmuls (f32 accumulation + f32 state), full-sequence chunk.
    run_bf16 = jax.jit(functools.partial(
        bidirectional_rnn, t_block_max=8, compute_dtype=jnp.bfloat16))
    out_bf, (h_bf, c_bf) = run_bf16(x, fwd_params, bck_params)
    jax.block_until_ready((out_bf, h_bf, c_bf))
    assert jnp.allclose(out_bf, ref_out, atol=5e-2, rtol=5e-2)
    assert jnp.allclose(h_bf, ref_h, atol=5e-2, rtol=5e-2)
    assert jnp.allclose(c_bf, ref_c, atol=5e-2, rtol=5e-2)

    print("KERNEL_OK")
</pallas_src>

<mosaic_0001>
module attributes {stable_mosaic.version = 11 : i64} {
  func.func @_lstm_chunk_kernel(%arg0: i32, %arg1: i32, %arg2: memref<1x4x8x128xf32, #tpu.memory_space<vmem>>, %arg3: memref<1x32x128xf32, #tpu.memory_space<vmem>>, %arg4: memref<1x4x8x32xf32, #tpu.memory_space<vmem>>, %arg5: memref<1x8x32xf32, #tpu.memory_space<vmem>>, %arg6: memref<1x8x32xf32, #tpu.memory_space<vmem>>, %arg7: memref<8x32xf32, #tpu.memory_space<vmem>>, %arg8: memref<8x32xf32, #tpu.memory_space<vmem>>) attributes {dimension_semantics = [#tpu.dimension_semantics<parallel>, #tpu.dimension_semantics<arbitrary>], iteration_bounds = array<i64: 2, 2>, scalar_prefetch = 0 : i64, scratch_operands = 2 : i64, tpu.core_type = #tpu.core_type<tc>, window_params = [{transform_indices = @transform_0, window_bounds = array<i64: 1, 4, 8, 128>}, {transform_indices = @transform_1, window_bounds = array<i64: 1, 32, 128>}, {transform_indices = @transform_2, window_bounds = array<i64: 1, 4, 8, 32>}, {transform_indices = @transform_3, window_bounds = array<i64: 1, 8, 32>}, {transform_indices = @transform_4, window_bounds = array<i64: 1, 8, 32>}]} {
    %c0_i32 = arith.constant 0 : i32
    %0 = arith.cmpi eq, %arg1, %c0_i32 : i32
    %1 = arith.extui %0 : i1 to i32
    %c0_i32_0 = arith.constant 0 : i32
    %2 = arith.cmpi ne, %1, %c0_i32_0 : i32
    scf.if %2 {
      %cst_90 = arith.constant 0.000000e+00 : f32
      %167 = vector.broadcast %cst_90 : f32 to vector<8x32xf32>
      %c0_91 = arith.constant 0 : index
      %c0_92 = arith.constant 0 : index
      %168 = vector.load %arg7[%c0_91, %c0_92] : memref<8x32xf32, #tpu.memory_space<vmem>>, vector<8x32xf32>
      tpu.vector_store %arg7[%c0_91, %c0_92], %167 {strides = array<i32>} : memref<8x32xf32, #tpu.memory_space<vmem>>, vector<8x32xf32>,
      %cst_93 = arith.constant 0.000000e+00 : f32
      %169 = vector.broadcast %cst_93 : f32 to vector<8x32xf32>
      %c0_94 = arith.constant 0 : index
      %c0_95 = arith.constant 0 : index
      %170 = vector.load %arg8[%c0_94, %c0_95] : memref<8x32xf32, #tpu.memory_space<vmem>>, vector<8x32xf32>
      tpu.vector_store %arg8[%c0_94, %c0_95], %169 {strides = array<i32>} : memref<8x32xf32, #tpu.memory_space<vmem>>, vector<8x32xf32>,
    } else {
    }
    %c0 = arith.constant 0 : index
    %c0_1 = arith.constant 0 : index
    %3 = vector.load %arg7[%c0, %c0_1] : memref<8x32xf32, #tpu.memory_space<vmem>>, vector<8x32xf32>
    %c0_2 = arith.constant 0 : index
    %c0_3 = arith.constant 0 : index
    %c0_4 = arith.constant 0 : index
    %c0_5 = arith.constant 0 : index
    %4 = vector.load %arg2[%c0_2, %c0_3, %c0_4, %c0_5] : memref<1x4x8x128xf32, #tpu.memory_space<vmem>>, vector<1x1x8x128xf32>
    %5 = vector.shape_cast %4 : vector<1x1x8x128xf32> to vector<8x128xf32>
    %c0_6 = arith.constant 0 : index
    %c0_7 = arith.constant 0 : index
    %c0_8 = arith.constant 0 : index
    %6 = vector.load %arg3[%c0_6, %c0_7, %c0_8] : memref<1x32x128xf32, #tpu.memory_space<vmem>>, vector<1x32x128xf32>
    %7 = vector.shape_cast %6 : vector<1x32x128xf32> to vector<32x128xf32>
    %cst = arith.constant dense<0.000000e+00> : vector<8x128xf32>
    %8 = tpu.matmul %3, %7, %cst {dimension_numbers = #tpu.dot_dimension_numbers<[1], [0], [0], [1], [0, 0, 1, 1], [], []>} : vector<8x32xf32>, vector<32x128xf32>, vector<8x128xf32> -> vector<8x128xf32>
    %9 = arith.addf %5, %8 : vector<8x128xf32>
    %10 = vector.extract_strided_slice %9 {offsets = [0, 0], sizes = [8, 32], strides = [1, 1]} : vector<8x128xf32> to vector<8x32xf32>
    %11 = arith.negf %10 : vector<8x32xf32>
    %12 = math.exp %11 : vector<8x32xf32>
    %cst_9 = arith.constant 1.000000e+00 : f32
    %13 = vector.broadcast %cst_9 : f32 to vector<8x32xf32>
    %14 = arith.addf %13, %12 : vector<8x32xf32>
    %15 = arith.divf %13, %14 : vector<8x32xf32>
    %16 = vector.extract_strided_slice %9 {offsets = [0, 32], sizes = [8, 32], strides = [1, 1]} : vector<8x128xf32> to vector<8x32xf32>
    %17 = arith.negf %16 : vector<8x32xf32>
    %18 = math.exp %17 : vector<8x32xf32>
    %cst_10 = arith.constant 1.000000e+00 : f32
    %19 = vector.broadcast %cst_10 : f32 to vector<8x32xf32>
    %20 = arith.addf %19, %18 : vector<8x32xf32>
    %21 = arith.divf %19, %20 : vector<8x32xf32>
    %22 = vector.extract_strided_slice %9 {offsets = [0, 64], sizes = [8, 32], strides = [1, 1]} : vector<8x128xf32> to vector<8x32xf32>
    %23 = math.tanh %22 : vector<8x32xf32>
    %24 = vector.extract_strided_slice %9 {offsets = [0, 96], sizes = [8, 32], strides = [1, 1]} : vector<8x128xf32> to vector<8x32xf32>
    %25 = arith.negf %24 : vector<8x32xf32>
    %26 = math.exp %25 : vector<8x32xf32>
    %cst_11 = arith.constant 1.000000e+00 : f32
    %27 = vector.broadcast %cst_11 : f32 to vector<8x32xf32>
    %28 = arith.addf %27, %26 : vector<8x32xf32>
    %29 = arith.divf %27, %28 : vector<8x32xf32>
    %c0_12 = arith.constant 0 : index
    %c0_13 = arith.constant 0 : index
    %30 = vector.load %arg8[%c0_12, %c0_13] : memref<8x32xf32, #tpu.memory_space<vmem>>, vector<8x32xf32>
    %31 = arith.mulf %21, %30 : vector<8x32xf32>
    %32 = arith.mulf %15, %23 : vector<8x32xf32>
    %33 = arith.addf %31, %32 : vector<8x32xf32>
    %34 = math.tanh %33 : vector<8x32xf32>
    %35 = arith.mulf %29, %34 : vector<8x32xf32>
    %c0_14 = arith.constant 0 : index
    %c0_15 = arith.constant 0 : index
    %36 = vector.load %arg7[%c0_14, %c0_15] : memref<8x32xf32, #tpu.memory_space<vmem>>, vector<8x32xf32>
    tpu.vector_store %arg7[%c0_14, %c0_15], %35 {strides = array<i32>} : memref<8x32xf32, #tpu.memory_space<vmem>>, vector<8x32xf32>,
    %c0_16 = arith.constant 0 : index
    %c0_17 = arith.constant 0 : index
    %37 = vector.load %arg8[%c0_16, %c0_17] : memref<8x32xf32, #tpu.memory_space<vmem>>, vector<8x32xf32>
    tpu.vector_store %arg8[%c0_16, %c0_17], %33 {strides = array<i32>} : memref<8x32xf32, #tpu.memory_space<vmem>>, vector<8x32xf32>,
    %c0_18 = arith.constant 0 : index
    %c0_19 = arith.constant 0 : index
    %c0_20 = arith.constant 0 : index
    %c0_21 = arith.constant 0 : index
    %38 = vector.load %arg4[%c0_18, %c0_19, %c0_20, %c0_21] : memref<1x4x8x32xf32, #tpu.memory_space<vmem>>, vector<1x1x8x32xf32>
    %39 = vector.shape_cast %38 : vector<1x1x8x32xf32> to vector<8x32xf32>
    %40 = vector.shape_cast %35 : vector<8x32xf32> to vector<1x1x8x32xf32>
    tpu.vector_store %arg4[%c0_18, %c0_19, %c0_20, %c0_21], %40 {strides = array<i32>} : memref<1x4x8x32xf32, #tpu.memory_space<vmem>>, vector<1x1x8x32xf32>,
    %c0_i32_22 = arith.constant 0 : i32
    %41 = arith.cmpi eq, %arg1, %c0_i32_22 : i32
    %42 = arith.extui %41 : i1 to i32
    %c0_i32_23 = arith.constant 0 : i32
    %43 = arith.cmpi ne, %42, %c0_i32_23 : i32
    scf.if %43 {
      %c0_90 = arith.constant 0 : index
      %c0_91 = arith.constant 0 : index
      %c0_92 = arith.constant 0 : index
      %167 = vector.load %arg5[%c0_90, %c0_91, %c0_92] : memref<1x8x32xf32, #tpu.memory_space<vmem>>, vector<1x8x32xf32>
      %168 = vector.shape_cast %167 : vector<1x8x32xf32> to vector<8x32xf32>
      %169 = vector.shape_cast %33 : vector<8x32xf32> to vector<1x8x32xf32>
      tpu.vector_store %arg5[%c0_90, %c0_91, %c0_92], %169 {strides = array<i32>} : memref<1x8x32xf32, #tpu.memory_space<vmem>>, vector<1x8x32xf32>,
    } else {
    }
    %c1_i32 = arith.constant 1 : i32
    %c0_24 = arith.constant 0 : index
    %c0_25 = arith.constant 0 : index
    %44 = vector.load %arg7[%c0_24, %c0_25] : memref<8x32xf32, #tpu.memory_space<vmem>>, vector<8x32xf32>
    %c0_26 = arith.constant 0 : index
    %45 = arith.index_cast %c1_i32 : i32 to index
    %c0_27 = arith.constant 0 : index
    %c0_28 = arith.constant 0 : index
    %46 = vector.load %arg2[%c0_26, %45, %c0_27, %c0_28] : memref<1x4x8x128xf32, #tpu.memory_space<vmem>>, vector<1x1x8x128xf32>
    %47 = vector.shape_cast %46 : vector<1x1x8x128xf32> to vector<8x128xf32>
    %c0_29 = arith.constant 0 : index
    %c0_30 = arith.constant 0 : index
    %c0_31 = arith.constant 0 : index
    %48 = vector.load %arg3[%c0_29, %c0_30, %c0_31] : memref<1x32x128xf32, #tpu.memory_space<vmem>>, vector<1x32x128xf32>
    %49 = vector.shape_cast %48 : vector<1x32x128xf32> to vector<32x128xf32>
    %cst_32 = arith.constant dense<0.000000e+00> : vector<8x128xf32>
    %50 = tpu.matmul %44, %49, %cst_32 {dimension_numbers = #tpu.dot_dimension_numbers<[1], [0], [0], [1], [0, 0, 1, 1], [], []>} : vector<8x32xf32>, vector<32x128xf32>, vector<8x128xf32> -> vector<8x128xf32>
    %51 = arith.addf %47, %50 : vector<8x128xf32>
    %52 = vector.extract_strided_slice %51 {offsets = [0, 0], sizes = [8, 32], strides = [1, 1]} : vector<8x128xf32> to vector<8x32xf32>
    %53 = arith.negf %52 : vector<8x32xf32>
    %54 = math.exp %53 : vector<8x32xf32>
    %cst_33 = arith.constant 1.000000e+00 : f32
    %55 = vector.broadcast %cst_33 : f32 to vector<8x32xf32>
    %56 = arith.addf %55, %54 : vector<8x32xf32>
    %57 = arith.divf %55, %56 : vector<8x32xf32>
    %58 = vector.extract_strided_slice %51 {offsets = [0, 32], sizes = [8, 32], strides = [1, 1]} : vector<8x128xf32> to vector<8x32xf32>
    %59 = arith.negf %58 : vector<8x32xf32>
    %60 = math.exp %59 : vector<8x32xf32>
    %cst_34 = arith.constant 1.000000e+00 : f32
    %61 = vector.broadcast %cst_34 : f32 to vector<8x32xf32>
    %62 = arith.addf %61, %60 : vector<8x32xf32>
    %63 = arith.divf %61, %62 : vector<8x32xf32>
    %64 = vector.extract_strided_slice %51 {offsets = [0, 64], sizes = [8, 32], strides = [1, 1]} : vector<8x128xf32> to vector<8x32xf32>
    %65 = math.tanh %64 : vector<8x32xf32>
    %66 = vector.extract_strided_slice %51 {offsets = [0, 96], sizes = [8, 32], strides = [1, 1]} : vector<8x128xf32> to vector<8x32xf32>
    %67 = arith.negf %66 : vector<8x32xf32>
    %68 = math.exp %67 : vector<8x32xf32>
    %cst_35 = arith.constant 1.000000e+00 : f32
    %69 = vector.broadcast %cst_35 : f32 to vector<8x32xf32>
    %70 = arith.addf %69, %68 : vector<8x32xf32>
    %71 = arith.divf %69, %70 : vector<8x32xf32>
    %c0_36 = arith.constant 0 : index
    %c0_37 = arith.constant 0 : index
    %72 = vector.load %arg8[%c0_36, %c0_37] : memref<8x32xf32, #tpu.memory_space<vmem>>, vector<8x32xf32>
    %73 = arith.mulf %63, %72 : vector<8x32xf32>
    %74 = arith.mulf %57, %65 : vector<8x32xf32>
    %75 = arith.addf %73, %74 : vector<8x32xf32>
    %76 = math.tanh %75 : vector<8x32xf32>
    %77 = arith.mulf %71, %76 : vector<8x32xf32>
    %c0_38 = arith.constant 0 : index
    %c0_39 = arith.constant 0 : index
    %78 = vector.load %arg7[%c0_38, %c0_39] : memref<8x32xf32, #tpu.memory_space<vmem>>, vector<8x32xf32>
    tpu.vector_store %arg7[%c0_38, %c0_39], %77 {strides = array<i32>} : memref<8x32xf32, #tpu.memory_space<vmem>>, vector<8x32xf32>,
    %c0_40 = arith.constant 0 : index
    %c0_41 = arith.constant 0 : index
    %79 = vector.load %arg8[%c0_40, %c0_41] : memref<8x32xf32, #tpu.memory_space<vmem>>, vector<8x32xf32>
    tpu.vector_store %arg8[%c0_40, %c0_41], %75 {strides = array<i32>} : memref<8x32xf32, #tpu.memory_space<vmem>>, vector<8x32xf32>,
    %c0_42 = arith.constant 0 : index
    %80 = arith.index_cast %c1_i32 : i32 to index
    %c0_43 = arith.constant 0 : index
    %c0_44 = arith.constant 0 : index
    %81 = vector.load %arg4[%c0_42, %80, %c0_43, %c0_44] : memref<1x4x8x32xf32, #tpu.memory_space<vmem>>, vector<1x1x8x32xf32>
    %82 = vector.shape_cast %81 : vector<1x1x8x32xf32> to vector<8x32xf32>
    %83 = vector.shape_cast %77 : vector<8x32xf32> to vector<1x1x8x32xf32>
    tpu.vector_store %arg4[%c0_42, %80, %c0_43, %c0_44], %83 {strides = array<i32>} : memref<1x4x8x32xf32, #tpu.memory_space<vmem>>, vector<1x1x8x32xf32>,
    %c2_i32 = arith.constant 2 : i32
    %c0_45 = arith.constant 0 : index
    %c0_46 = arith.constant 0 : index
    %84 = vector.load %arg7[%c0_45, %c0_46] : memref<8x32xf32, #tpu.memory_space<vmem>>, vector<8x32xf32>
    %c0_47 = arith.constant 0 : index
    %85 = arith.index_cast %c2_i32 : i32 to index
    %c0_48 = arith.constant 0 : index
    %c0_49 = arith.constant 0 : index
    %86 = vector.load %arg2[%c0_47, %85, %c0_48, %c0_49] : memref<1x4x8x128xf32, #tpu.memory_space<vmem>>, vector<1x1x8x128xf32>
    %87 = vector.shape_cast %86 : vector<1x1x8x128xf32> to vector<8x128xf32>
    %c0_50 = arith.constant 0 : index
    %c0_51 = arith.constant 0 : index
    %c0_52 = arith.constant 0 : index
    %88 = vector.load %arg3[%c0_50, %c0_51, %c0_52] : memref<1x32x128xf32, #tpu.memory_space<vmem>>, vector<1x32x128xf32>
    %89 = vector.shape_cast %88 : vector<1x32x128xf32> to vector<32x128xf32>
    %cst_53 = arith.constant dense<0.000000e+00> : vector<8x128xf32>
    %90 = tpu.matmul %84, %89, %cst_53 {dimension_numbers = #tpu.dot_dimension_numbers<[1], [0], [0], [1], [0, 0, 1, 1], [], []>} : vector<8x32xf32>, vector<32x128xf32>, vector<8x128xf32> -> vector<8x128xf32>
    %91 = arith.addf %87, %90 : vector<8x128xf32>
    %92 = vector.extract_strided_slice %91 {offsets = [0, 0], sizes = [8, 32], strides = [1, 1]} : vector<8x128xf32> to vector<8x32xf32>
    %93 = arith.negf %92 : vector<8x32xf32>
    %94 = math.exp %93 : vector<8x32xf32>
    %cst_54 = arith.constant 1.000000e+00 : f32
    %95 = vector.broadcast %cst_54 : f32 to vector<8x32xf32>
    %96 = arith.addf %95, %94 : vector<8x32xf32>
    %97 = arith.divf %95, %96 : vector<8x32xf32>
    %98 = vector.extract_strided_slice %91 {offsets = [0, 32], sizes = [8, 32], strides = [1, 1]} : vector<8x128xf32> to vector<8x32xf32>
    %99 = arith.negf %98 : vector<8x32xf32>
    %100 = math.exp %99 : vector<8x32xf32>
    %cst_55 = arith.constant 1.000000e+00 : f32
    %101 = vector.broadcast %cst_55 : f32 to vector<8x32xf32>
    %102 = arith.addf %101, %100 : vector<8x32xf32>
    %103 = arith.divf %101, %102 : vector<8x32xf32>
    %104 = vector.extract_strided_slice %91 {offsets = [0, 64], sizes = [8, 32], strides = [1, 1]} : vector<8x128xf32> to vector<8x32xf32>
    %105 = math.tanh %104 : vector<8x32xf32>
    %106 = vector.extract_strided_slice %91 {offsets = [0, 96], sizes = [8, 32], strides = [1, 1]} : vector<8x128xf32> to vector<8x32xf32>
    %107 = arith.negf %106 : vector<8x32xf32>
    %108 = math.exp %107 : vector<8x32xf32>
    %cst_56 = arith.constant 1.000000e+00 : f32
    %109 = vector.broadcast %cst_56 : f32 to vector<8x32xf32>
    %110 = arith.addf %109, %108 : vector<8x32xf32>
    %111 = arith.divf %109, %110 : vector<8x32xf32>
    %c0_57 = arith.constant 0 : index
    %c0_58 = arith.constant 0 : index
    %112 = vector.load %arg8[%c0_57, %c0_58] : memref<8x32xf32, #tpu.memory_space<vmem>>, vector<8x32xf32>
    %113 = arith.mulf %103, %112 : vector<8x32xf32>
    %114 = arith.mulf %97, %105 : vector<8x32xf32>
    %115 = arith.addf %113, %114 : vector<8x32xf32>
    %116 = math.tanh %115 : vector<8x32xf32>
    %117 = arith.mulf %111, %116 : vector<8x32xf32>
    %c0_59 = arith.constant 0 : index
    %c0_60 = arith.constant 0 : index
    %118 = vector.load %arg7[%c0_59, %c0_60] : memref<8x32xf32, #tpu.memory_space<vmem>>, vector<8x32xf32>
    tpu.vector_store %arg7[%c0_59, %c0_60], %117 {strides = array<i32>} : memref<8x32xf32, #tpu.memory_space<vmem>>, vector<8x32xf32>,
    %c0_61 = arith.constant 0 : index
    %c0_62 = arith.constant 0 : index
    %119 = vector.load %arg8[%c0_61, %c0_62] : memref<8x32xf32, #tpu.memory_space<vmem>>, vector<8x32xf32>
    tpu.vector_store %arg8[%c0_61, %c0_62], %115 {strides = array<i32>} : memref<8x32xf32, #tpu.memory_space<vmem>>, vector<8x32xf32>,
    %c0_63 = arith.constant 0 : index
    %120 = arith.index_cast %c2_i32 : i32 to index
    %c0_64 = arith.constant 0 : index
    %c0_65 = arith.constant 0 : index
    %121 = vector.load %arg4[%c0_63, %120, %c0_64, %c0_65] : memref<1x4x8x32xf32, #tpu.memory_space<vmem>>, vector<1x1x8x32xf32>
    %122 = vector.shape_cast %121 : vector<1x1x8x32xf32> to vector<8x32xf32>
    %123 = vector.shape_cast %117 : vector<8x32xf32> to vector<1x1x8x32xf32>
    tpu.vector_store %arg4[%c0_63, %120, %c0_64, %c0_65], %123 {strides = array<i32>} : memref<1x4x8x32xf32, #tpu.memory_space<vmem>>, vector<1x1x8x32xf32>,
    %c3_i32 = arith.constant 3 : i32
    %c0_66 = arith.constant 0 : index
    %c0_67 = arith.constant 0 : index
    %124 = vector.load %arg7[%c0_66, %c0_67] : memref<8x32xf32, #tpu.memory_space<vmem>>, vector<8x32xf32>
    %c0_68 = arith.constant 0 : index
    %125 = arith.index_cast %c3_i32 : i32 to index
    %c0_69 = arith.constant 0 : index
    %c0_70 = arith.constant 0 : index
    %126 = vector.load %arg2[%c0_68, %125, %c0_69, %c0_70] : memref<1x4x8x128xf32, #tpu.memory_space<vmem>>, vector<1x1x8x128xf32>
    %127 = vector.shape_cast %126 : vector<1x1x8x128xf32> to vector<8x128xf32>
    %c0_71 = arith.constant 0 : index
    %c0_72 = arith.constant 0 : index
    %c0_73 = arith.constant 0 : index
    %128 = vector.load %arg3[%c0_71, %c0_72, %c0_73] : memref<1x32x128xf32, #tpu.memory_space<vmem>>, vector<1x32x128xf32>
    %129 = vector.shape_cast %128 : vector<1x32x128xf32> to vector<32x128xf32>
    %cst_74 = arith.constant dense<0.000000e+00> : vector<8x128xf32>
    %130 = tpu.matmul %124, %129, %cst_74 {dimension_numbers = #tpu.dot_dimension_numbers<[1], [0], [0], [1], [0, 0, 1, 1], [], []>} : vector<8x32xf32>, vector<32x128xf32>, vector<8x128xf32> -> vector<8x128xf32>
    %131 = arith.addf %127, %130 : vector<8x128xf32>
    %132 = vector.extract_strided_slice %131 {offsets = [0, 0], sizes = [8, 32], strides = [1, 1]} : vector<8x128xf32> to vector<8x32xf32>
    %133 = arith.negf %132 : vector<8x32xf32>
    %134 = math.exp %133 : vector<8x32xf32>
    %cst_75 = arith.constant 1.000000e+00 : f32
    %135 = vector.broadcast %cst_75 : f32 to vector<8x32xf32>
    %136 = arith.addf %135, %134 : vector<8x32xf32>
    %137 = arith.divf %135, %136 : vector<8x32xf32>
    %138 = vector.extract_strided_slice %131 {offsets = [0, 32], sizes = [8, 32], strides = [1, 1]} : vector<8x128xf32> to vector<8x32xf32>
    %139 = arith.negf %138 : vector<8x32xf32>
    %140 = math.exp %139 : vector<8x32xf32>
    %cst_76 = arith.constant 1.000000e+00 : f32
    %141 = vector.broadcast %cst_76 : f32 to vector<8x32xf32>
    %142 = arith.addf %141, %140 : vector<8x32xf32>
    %143 = arith.divf %141, %142 : vector<8x32xf32>
    %144 = vector.extract_strided_slice %131 {offsets = [0, 64], sizes = [8, 32], strides = [1, 1]} : vector<8x128xf32> to vector<8x32xf32>
    %145 = math.tanh %144 : vector<8x32xf32>
    %146 = vector.extract_strided_slice %131 {offsets = [0, 96], sizes = [8, 32], strides = [1, 1]} : vector<8x128xf32> to vector<8x32xf32>
    %147 = arith.negf %146 : vector<8x32xf32>
    %148 = math.exp %147 : vector<8x32xf32>
    %cst_77 = arith.constant 1.000000e+00 : f32
    %149 = vector.broadcast %cst_77 : f32 to vector<8x32xf32>
    %150 = arith.addf %149, %148 : vector<8x32xf32>
    %151 = arith.divf %149, %150 : vector<8x32xf32>
    %c0_78 = arith.constant 0 : index
    %c0_79 = arith.constant 0 : index
    %152 = vector.load %arg8[%c0_78, %c0_79] : memref<8x32xf32, #tpu.memory_space<vmem>>, vector<8x32xf32>
    %153 = arith.mulf %143, %152 : vector<8x32xf32>
    %154 = arith.mulf %137, %145 : vector<8x32xf32>
    %155 = arith.addf %153, %154 : vector<8x32xf32>
    %156 = math.tanh %155 : vector<8x32xf32>
    %157 = arith.mulf %151, %156 : vector<8x32xf32>
    %c0_80 = arith.constant 0 : index
    %c0_81 = arith.constant 0 : index
    %158 = vector.load %arg7[%c0_80, %c0_81] : memref<8x32xf32, #tpu.memory_space<vmem>>, vector<8x32xf32>
    tpu.vector_store %arg7[%c0_80, %c0_81], %157 {strides = array<i32>} : memref<8x32xf32, #tpu.memory_space<vmem>>, vector<8x32xf32>,
    %c0_82 = arith.constant 0 : index
    %c0_83 = arith.constant 0 : index
    %159 = vector.load %arg8[%c0_82, %c0_83] : memref<8x32xf32, #tpu.memory_space<vmem>>, vector<8x32xf32>
    tpu.vector_store %arg8[%c0_82, %c0_83], %155 {strides = array<i32>} : memref<8x32xf32, #tpu.memory_space<vmem>>, vector<8x32xf32>,
    %c0_84 = arith.constant 0 : index
    %160 = arith.index_cast %c3_i32 : i32 to index
    %c0_85 = arith.constant 0 : index
    %c0_86 = arith.constant 0 : index
    %161 = vector.load %arg4[%c0_84, %160, %c0_85, %c0_86] : memref<1x4x8x32xf32, #tpu.memory_space<vmem>>, vector<1x1x8x32xf32>
    %162 = vector.shape_cast %161 : vector<1x1x8x32xf32> to vector<8x32xf32>
    %163 = vector.shape_cast %157 : vector<8x32xf32> to vector<1x1x8x32xf32>
    tpu.vector_store %arg4[%c0_84, %160, %c0_85, %c0_86], %163 {strides = array<i32>} : memref<1x4x8x32xf32, #tpu.memory_space<vmem>>, vector<1x1x8x32xf32>,
    %c3_i32_87 = arith.constant 3 : i32
    %c1_i32_88 = arith.constant 1 : i32
    %164 = arith.cmpi eq, %arg1, %c1_i32_88 : i32
    %165 = arith.extui %164 : i1 to i32
    %c0_i32_89 = arith.constant 0 : i32
    %166 = arith.cmpi ne, %165, %c0_i32_89 : i32
    scf.if %166 {
      %c0_90 = arith.constant 0 : index
      %c0_91 = arith.constant 0 : index
      %167 = vector.load %arg8[%c0_90, %c0_91] : memref<8x32xf32, #tpu.memory_space<vmem>>, vector<8x32xf32>
      %c0_92 = arith.constant 0 : index
      %c0_93 = arith.constant 0 : index
      %c0_94 = arith.constant 0 : index
      %168 = vector.load %arg6[%c0_92, %c0_93, %c0_94] : memref<1x8x32xf32, #tpu.memory_space<vmem>>, vector<1x8x32xf32>
      %169 = vector.shape_cast %168 : vector<1x8x32xf32> to vector<8x32xf32>
      %170 = vector.shape_cast %167 : vector<8x32xf32> to vector<1x8x32xf32>
      tpu.vector_store %arg6[%c0_92, %c0_93, %c0_94], %170 {strides = array<i32>} : memref<1x8x32xf32, #tpu.memory_space<vmem>>, vector<1x8x32xf32>,
    } else {
    }
    return
  }
  func.func @transform_0(%arg0: i32, %arg1: i32) -> (i32, i32, i32, i32) {
    %c0_i32 = arith.constant 0 : i32
    %c0_i32_0 = arith.constant 0 : i32
    %c0_i32_1 = arith.constant 0 : i32
    return %arg0, %arg1, %c0_i32, %c0_i32_0 : i32, i32, i32, i32
  }
  func.func @transform_1(%arg0: i32, %arg1: i32) -> (i32, i32, i32) {
    %c0_i32 = arith.constant 0 : i32
    %c0_i32_0 = arith.constant 0 : i32
    %c0_i32_1 = arith.constant 0 : i32
    return %arg0, %c0_i32, %c0_i32_0 : i32, i32, i32
  }
  func.func @transform_2(%arg0: i32, %arg1: i32) -> (i32, i32, i32, i32) {
    %c0_i32 = arith.constant 0 : i32
    %c0_i32_0 = arith.constant 0 : i32
    %c0_i32_1 = arith.constant 0 : i32
    return %arg0, %arg1, %c0_i32, %c0_i32_0 : i32, i32, i32, i32
  }
  func.func @transform_3(%arg0: i32, %arg1: i32) -> (i32, i32, i32) {
    %c0_i32 = arith.constant 0 : i32
    %c0_i32_0 = arith.constant 0 : i32
    %c0_i32_1 = arith.constant 0 : i32
    return %arg0, %c0_i32, %c0_i32_0 : i32, i32, i32
  }
  func.func @transform_4(%arg0: i32, %arg1: i32) -> (i32, i32, i32) {
    %c0_i32 = arith.constant 0 : i32
    %c0_i32_0 = arith.constant 0 : i32
    %c0_i32_1 = arith.constant 0 : i32
    return %arg0, %c0_i32, %c0_i32_0 : i32, i32, i32
  }
}

</mosaic_0001>

<llo_original>
// kernel: bidirectional_rnn.2
$region0: #{bidirectional_rnn.2}
  #allocation0 [shape = 'u32[]', space=smem, size = 0x4, offset = 0x4, fixed_abs, tag = 'smem constant byte address 0x4 - core index']
  #allocation1 [shape = 'u32[144,128]{1,0:T(1,128)}', space=vmem, size = 0x12000, scoped, tag = 'internal scratch']
  #allocation2 [shape = 'f32[8,32]{1,0:T(8,128)}', space=vmem, size = 0x1000, scoped, tag = 'scratch operand']
  #allocation3 [shape = 'f32[8,32]{1,0:T(8,128)}', space=vmem, size = 0x1000, scoped, tag = 'scratch operand']
  %s0 = inlined_call_operand.vmem [shape: f32[2,8,8,128], index: 0, kind: input, shape index: {}]
  %s1 = inlined_call_operand.vmem [shape: f32[2,32,128], index: 1, kind: input, shape index: {}]
  %s2 = inlined_call_operand.vmem [shape: f32[2,8,8,32], index: 2, kind: output, shape index: {0}]
  %s3 = inlined_call_operand.vmem [shape: f32[2,8,32], index: 3, kind: output, shape index: {1}]
  %s4 = inlined_call_operand.vmem [shape: f32[2,8,32], index: 4, kind: output, shape index: {2}]
  %5 = xla_tuple %s2, %s3, %s4
  %s6 = sld [smem:[#allocation0]]
  $region69: #{bidirectional_rnn.2} parent=0
    _
  %s8 = ssub.s32 1, %s6
  %s9 = scalar_select 0, %s8, %s6
  loop: start=0, step=1, limit=6
  $region2: #{bidirectional_rnn.2} parent=0 // loop_pre_header
    _
  $region3: #{bidirectional_rnn.2} parent=0 // loop_header
    %s11 = sphi 0, %s15
    %p12 = scmp.ge.s32.totalorder %s11, 6
    %s18 = sphi 0, %s30
    %s19 = sphi 0, %s26
    %s20 = sphi 0, %s18
    %s21 = sphi 0, %s19
    %s22 = sphi 0, %s20
    %s23 = sphi 0, %s21
    %s35 = sphi 0, %s37
    %s38 = sphi 0, %s35
    %s39 = sphi 0, %s38
    %s55 = sphi 0, %s39
    %s61 = sphi 0, %s63
    %s64 = sphi 0, %s61
    %s65 = sphi 0, %s64
    %s81 = sphi 0, %s65
    %s89 = sphi 0, %s91
    %s92 = sphi 0, %s89
    %s93 = sphi 0, %s92
    %s109 = sphi 0, %s93
    %s115 = sphi 0, %s117
    %s118 = sphi 0, %s115
    %s119 = sphi 0, %s118
    %s135 = sphi 0, %s119
    %s141 = sphi 0, %s143
    %s144 = sphi 0, %s141
    %s145 = sphi 0, %s144
    %s161 = sphi 0, %s145
  $region4: #{bidirectional_rnn.2} parent=0 // loop_header_branch
    %14 = sbr.rel (%p12) target = $region8
  $region5: #{bidirectional_rnn.2} parent=0 // loop_body
    %s16 = ssub.s32 %s11, 1
    %s17 = ssub.s32 %s11, 2
    %s24 = sadd.s32 1, %s19
    %p25 = scmp.ge.s32.totalorder %s24, 2
    %s26 = scalar_select %p25, 0, %s24
    %s27 = sadd.s32 1, %s18
    %s28 = scalar_select %p25, %s27, %s18
    %p29 = scmp.ge.s32.totalorder %s28, 2
    %s30 = scalar_select %p29, 0, %s28
    %s31 = ssub.s32 %s18, %s30
    %s32 = ssub.s32 %s19, %s26
    %s33 = sor.u32 %s31, %s32
    %p34 = scmp.eq.s32.totalorder %s33, 0
    %s36 = sadd.s32 %s35, 1
    %s37 = scalar_select %p34, %s35, %s36
    %p40 = pneg %p34
    %p41 = scmp.eq.s32.totalorder %s11, 3
    %p42 = por %p40, %p41
    %p43 = scmp.ne.s32.totalorder %s35, %s38
    %p44 = scmp.eq.s32.totalorder %s11, 0
    %p45 = por %p43, %p44
    %p46 = scmp.ne.s32.totalorder %s35, %s38
    %p47 = scmp.eq.s32.totalorder %s16, 3
    %p48 = por %p46, %p47
    %p49 = scmp.ne.s32.totalorder %s38, %s39
    %p50 = scmp.eq.s32.totalorder %s16, 0
    %p51 = por %p49, %p50
    %p52 = scmp.ne.s32.totalorder %s38, %s39
    %p53 = scmp.eq.s32.totalorder %s17, 3
    %p54 = por %p52, %p53
    %p56 = scmp.ne.s32.totalorder %s39, %s55
    %p57 = scmp.eq.s32.totalorder %s17, 0
    %p58 = por %p56, %p57
    %s59 = ssub.s32 %s18, %s30
    %p60 = scmp.eq.s32.totalorder %s59, 0
    %s62 = sadd.s32 %s61, 1
    %s63 = scalar_select %p60, %s61, %s62
    %p66 = pneg %p60
    %p67 = scmp.eq.s32.totalorder %s11, 3
    %p68 = por %p66, %p67
    %p69 = scmp.ne.s32.totalorder %s61, %s64
    %p70 = scmp.eq.s32.totalorder %s11, 0
    %p71 = por %p69, %p70
    %p72 = scmp.ne.s32.totalorder %s61, %s64
    %p73 = scmp.eq.s32.totalorder %s16, 3
    %p74 = por %p72, %p73
    %p75 = scmp.ne.s32.totalorder %s64, %s65
    %p76 = scmp.eq.s32.totalorder %s16, 0
    %p77 = por %p75, %p76
    %p78 = scmp.ne.s32.totalorder %s64, %s65
    %p79 = scmp.eq.s32.totalorder %s17, 3
    %p80 = por %p78, %p79
    %p82 = scmp.ne.s32.totalorder %s65, %s81
    %p83 = scmp.eq.s32.totalorder %s17, 0
    %p84 = por %p82, %p83
    %s85 = ssub.s32 %s18, %s30
    %s86 = ssub.s32 %s19, %s26
    %s87 = sor.u32 %s85, %s86
    %p88 = scmp.eq.s32.totalorder %s87, 0
    %s90 = sadd.s32 %s89, 1
    %s91 = scalar_select %p88, %s89, %s90
    %p94 = pneg %p88
    %p95 = scmp.eq.s32.totalorder %s11, 3
    %p96 = por %p94, %p95
    %p97 = scmp.ne.s32.totalorder %s89, %s92
    %p98 = scmp.eq.s32.totalorder %s11, 0
    %p99 = por %p97, %p98
    %p100 = scmp.ne.s32.totalorder %s89, %s92
    %p101 = scmp.eq.s32.totalorder %s16, 3
    %p102 = por %p100, %p101
    %p103 = scmp.ne.s32.totalorder %s92, %s93
    %p104 = scmp.eq.s32.totalorder %s16, 0
    %p105 = por %p103, %p104
    %p106 = scmp.ne.s32.totalorder %s92, %s93
    %p107 = scmp.eq.s32.totalorder %s17, 3
    %p108 = por %p106, %p107
    %p110 = scmp.ne.s32.totalorder %s93, %s109
    %p111 = scmp.eq.s32.totalorder %s17, 0
    %p112 = por %p110, %p111
    %s113 = ssub.s32 %s18, %s30
    %p114 = scmp.eq.s32.totalorder %s113, 0
    %s116 = sadd.s32 %s115, 1
    %s117 = scalar_select %p114, %s115, %s116
    %p120 = pneg %p114
    %p121 = scmp.eq.s32.totalorder %s11, 3
    %p122 = por %p120, %p121
    %p123 = scmp.ne.s32.totalorder %s115, %s118
    %p124 = scmp.eq.s32.totalorder %s11, 0
    %p125 = por %p123, %p124
    %p126 = scmp.ne.s32.totalorder %s115, %s118
    %p127 = scmp.eq.s32.totalorder %s16, 3
    %p128 = por %p126, %p127
    %p129 = scmp.ne.s32.totalorder %s118, %s119
    %p130 = scmp.eq.s32.totalorder %s16, 0
    %p131 = por %p129, %p130
    %p132 = scmp.ne.s32.totalorder %s118, %s119
    %p133 = scmp.eq.s32.totalorder %s17, 3
    %p134 = por %p132, %p133
    %p136 = scmp.ne.s32.totalorder %s119, %s135
    %p137 = scmp.eq.s32.totalorder %s17, 0
    %p138 = por %p136, %p137
    %s139 = ssub.s32 %s18, %s30
    %p140 = scmp.eq.s32.totalorder %s139, 0
    %s142 = sadd.s32 %s141, 1
    %s143 = scalar_select %p140, %s141, %s142
    %p146 = pneg %p140
    %p147 = scmp.eq.s32.totalorder %s11, 3
    %p148 = por %p146, %p147
    %p149 = scmp.ne.s32.totalorder %s141, %s144
    %p150 = scmp.eq.s32.totalorder %s11, 0
    %p151 = por %p149, %p150
    %p152 = scmp.ne.s32.totalorder %s141, %s144
    %p153 = scmp.eq.s32.totalorder %s16, 3
    %p154 = por %p152, %p153
    %p155 = scmp.ne.s32.totalorder %s144, %s145
    %p156 = scmp.eq.s32.totalorder %s16, 0
    %p157 = por %p155, %p156
    %p158 = scmp.ne.s32.totalorder %s144, %s145
    %p159 = scmp.eq.s32.totalorder %s17, 3
    %p160 = por %p158, %p159
    %p162 = scmp.ne.s32.totalorder %s145, %s161
    %p163 = scmp.eq.s32.totalorder %s17, 0
    %p164 = por %p162, %p163
    %p165 = scmp.le.s32.totalorder 1, %s11
    %p166 = scmp.lt.s32.totalorder %s11, 5
    %p167 = pnand %p165, %p166
    %p168 = pneg %p167
    // Predicated region
    $region9: #{bidirectional_rnn.2} parent=5 // pred_check
      _
    $region10: #{bidirectional_rnn.2} parent=5 // pred_check_branch
      %170 = sbr.rel (%p167) target = $region12
    $region11: #{bidirectional_rnn.2} parent=5 // pred_region
      %s171 = ssub.s32 %s11, 1
    $region12: #{bidirectional_rnn.2} parent=5 // pred_fallthru
      _
    %p172 = scmp.lt.s32.totalorder %s11, 4
    // Predicated region
    $region13: #{bidirectional_rnn.2} parent=5 // pred_check
      %p173 = pneg %p172
    $region14: #{bidirectional_rnn.2} parent=5 // pred_check_branch
      %175 = sbr.rel (%p173) target = $region16
    $region15: #{bidirectional_rnn.2} parent=5 // pred_region
      // Predicated region
      $region17: #{bidirectional_rnn.2} parent=15 // pred_check
        %p176 = pneg %p45
      $region18: #{bidirectional_rnn.2} parent=15 // pred_check_branch
        %178 = sbr.rel (%p176) target = $region20
      $region19: #{bidirectional_rnn.2} parent=15 // pred_region
        %s179 = smul.u32 4, %s19
        %p180 = scmp.lt.s32.totalorder %s18, 1
        %s181 = scalar_select %p180, %s18, 1
        %p182 = scmp.lt.s32.totalorder %s179, 7
        %s183 = scalar_select %p182, %s179, 7
        %s184 = smul.addr %s181, 8
        %s185 = sadd.s32 %s183, %s184
        %s186 = smul.addr %s185, 8
        %s187 = scalar_lea.vmem %s0, %s186
        %s188 = smul.u32 4, %s19
      $region20: #{bidirectional_rnn.2} parent=15 // pred_fallthru
        _
      // Predicated region
      $region21: #{bidirectional_rnn.2} parent=15 // pred_check
        %p189 = pneg %p71
      $region22: #{bidirectional_rnn.2} parent=15 // pred_check_branch
        %191 = sbr.rel (%p189) target = $region24
      $region23: #{bidirectional_rnn.2} parent=15 // pred_region
        %p192 = scmp.lt.s32.totalorder %s18, 1
        %s193 = scalar_select %p192, %s18, 1
        %s194 = smul.addr %s193, 4
        %s195 = smul.addr %s194, 8
        %s196 = scalar_lea.vmem %s1, %s195
      $region24: #{bidirectional_rnn.2} parent=15 // pred_fallthru
        _
    $region16: #{bidirectional_rnn.2} parent=5 // pred_fallthru
      _
    %p197 = scmp.le.s32.totalorder 1, %s11
    %p198 = scmp.lt.s32.totalorder %s11, 5
    %p199 = pnand %p197, %p198
    %p200 = pneg %p199
    // Predicated region
    $region25: #{bidirectional_rnn.2} parent=5 // pred_check
      _
    $region26: #{bidirectional_rnn.2} parent=5 // pred_check_branch
      %202 = sbr.rel (%p199) target = $region28
    $region27: #{bidirectional_rnn.2} parent=5 // pred_region
      %s203 = ssub.s32 %s11, 1
      %s204 = smul.u32 4, %s21
      %p205 = scmp.lt.s32.totalorder %s20, 1
      %s206 = scalar_select %p205, %s20, 1
      %p207 = scmp.lt.s32.totalorder %s204, 7
      %s208 = scalar_select %p207, %s204, 7
      %s209 = smul.addr %s206, 8
      %s210 = sadd.s32 %s208, %s209
      %s211 = smul.addr %s210, 8
      %s212 = scalar_lea.vmem %s0, %s211
      %p213 = pneg %p51
      %p214 = pneg %p48
      %p215 = scmp.lt.s32.totalorder %s20, 1
      %s216 = scalar_select %p215, %s20, 1
      %s217 = smul.addr %s216, 4
      %s218 = smul.addr %s217, 8
      %s219 = scalar_lea.vmem %s1, %s218
      %p220 = pneg %p77
      %p221 = pneg %p74
      %p222 = pneg %p105
      %p223 = pneg %p102
      %s224 = smul.u32 4, %s21
      %p225 = scmp.lt.s32.totalorder %s20, 1
      %s226 = scalar_select %p225, %s20, 1
      %p227 = scmp.lt.s32.totalorder %s224, 7
      %s228 = scalar_select %p227, %s224, 7
      %s229 = smul.addr %s226, 8
      %s230 = sadd.s32 %s228, %s229
      %s231 = smul.addr %s230, 8
      %s232 = scalar_lea.vmem %s2, %s231
      %p233 = pneg %p131
      %p234 = pneg %p128
      %p235 = scmp.lt.s32.totalorder %s20, 1
      %s236 = scalar_select %p235, %s20, 1
      %s237 = smul.addr %s236, 8
      %s238 = scalar_lea.vmem %s3, %s237
      %p239 = pneg %p157
      %p240 = pneg %p154
      %p241 = scmp.lt.s32.totalorder %s20, 1
      %s242 = scalar_select %p241, %s20, 1
      %s243 = smul.addr %s242, 8
      %s244 = scalar_lea.vmem %s4, %s243
      %s245 = smul.u32 4, %s21
      %p246 = scmp.lt.s32.totalorder %s20, 1
      %s247 = scalar_select %p246, %s20, 1
      %p248 = scmp.lt.s32.totalorder %s245, 7
      %s249 = scalar_select %p248, %s245, 7
      %s250 = smul.addr %s247, 8
      %s251 = sadd.s32 %s249, %s250
      %s252 = smul.addr %s251, 8
      %s253 = scalar_lea.vmem %s0, %s252
      %s254 = smul.u32 4, %s21
      %p255 = scmp.lt.s32.totalorder %s20, 1
      %s256 = scalar_select %p255, %s20, 1
      %s257 = smul.addr %s256, 4
      %s258 = smul.addr %s257, 8
      %s259 = scalar_lea.vmem %s1, %s258
      %s260 = smul.u32 4, %s21
      %p261 = scmp.lt.s32.totalorder %s20, 1
      %s262 = scalar_select %p261, %s20, 1
      %p263 = scmp.lt.s32.totalorder %s260, 7
      %s264 = scalar_select %p263, %s260, 7
      %s265 = smul.addr %s262, 8
      %s266 = sadd.s32 %s264, %s265
      %s267 = smul.addr %s266, 8
      %s268 = scalar_lea.vmem %s2, %s267
      %s269 = smul.u32 4, %s21
      %p270 = scmp.lt.s32.totalorder %s20, 1
      %s271 = scalar_select %p270, %s20, 1
      %s272 = smul.addr %s271, 8
      %s273 = scalar_lea.vmem %s3, %s272
      %p274 = scmp.lt.s32.totalorder %s20, 1
      %s275 = scalar_select %p274, %s20, 1
      %s276 = smul.addr %s275, 8
      %s277 = scalar_lea.vmem %s4, %s276
      %p278 = scmp.eq.s32.totalorder %s21, 0
      // Predicated region
      $region29: #{bidirectional_rnn.2} parent=27 // pred_check
        %p279 = pneg %p278
      $region30: #{bidirectional_rnn.2} parent=27 // pred_check_branch
        %281 = sbr.rel (%p279) target = $region32
      $region31: #{bidirectional_rnn.2} parent=27 // pred_region
        %vm282 = vcmask 261120
        %283 = vst.msk [vmem:[#allocation2] sm:$0xff] %vm282, 0.0
        %284 = vst.msk [vmem:[#allocation3] sm:$0xff] %vm282, 0.0
      $region32: #{bidirectional_rnn.2} parent=27 // pred_fallthru
        _
      %v285 = vld [vmem:[#allocation2] sm:$0xff]
      %v286 = vld [vmem:[%s253] sm:$0xff]
      %v287 = vld [vmem:[%s259] sm:$0xff]
      %v288 = vld [vmem:[%s259 + $0x8] sm:$0xff]
      %v289 = vld [vmem:[%s259 + $0x10] sm:$0xff]
      %v290 = vld [vmem:[%s259 + $0x18] sm:$0xff]
      %vm291 = vcmask 261120
      %v293 = vsel %vm291, %v285, 0
      %295 = vmatprep.subr.mxu0 0.0
      %296 = vmatpush1.msra.mxu0 %v287
      %297 = vmatprep.subr.mxu0 0.0
      %298 = vmatpush1.msra.mxu0 %v288
      %299 = vmatprep.subr.mxu0 0.0
      %300 = vmatpush1.msra.mxu0 %v289
      %301 = vmatprep.subr.mxu0 0.0
      %302 = vmatpush1.msra.mxu0 %v290
      %303 = vmatprep.subr.mxu0 0.0
      %304 = vmatpush1.msra.mxu0 0.0
      %305 = vmatprep.subr.mxu0 0.0
      %306 = vmatpush1.msra.mxu0 0.0
      %307 = vmatprep.subr.mxu0 0.0
      %308 = vmatpush1.msra.mxu0 0.0
      %309 = vmatprep.subr.mxu0 0.0
      %310 = vmatpush1.msra.mxu0 0.0
      %311 = vmatprep.subr.mxu0 0.0
      %312 = vmatpush1.msra.mxu0 0.0
      %313 = vmatprep.subr.mxu0 0.0
      %314 = vmatpush1.msra.mxu0 0.0
      %315 = vmatprep.subr.mxu0 0.0
      %316 = vmatpush1.msra.mxu0 0.0
      %317 = vmatprep.subr.mxu0 0.0
      %318 = vmatpush1.msra.mxu0 0.0
      %319 = vmatprep.subr.mxu0 0.0
      %320 = vmatpush1.msra.mxu0 0.0
      %321 = vmatprep.subr.mxu0 0.0
      %322 = vmatpush1.msra.mxu0 0.0
      %323 = vmatprep.subr.mxu0 0.0
      %324 = vmatpush1.msra.mxu0 0.0
      %325 = vmatprep.subr.mxu0 0.0
      %326 = vmatpush1.msra.mxu0 0.0
      %327 = vmatprep.subr.mxu0 0.0
      %328 = vmatpush1.msra.mxu0 0.0
      %329 = vmatprep.subr.mxu0 0.0
      %330 = vmatpush1.msra.mxu0 0.0
      %331 = vmatprep.subr.mxu0 0.0
      %332 = vmatpush1.msra.mxu0 0.0
      %333 = vmatprep.subr.mxu0 0.0
      %334 = vmatpush1.msra.mxu0 0.0
      %335 = vmatprep.subr.mxu0 0.0
      %336 = vmatpush1.msra.mxu0 0.0
      %337 = vmatprep.subr.mxu0 0.0
      %338 = vmatpush1.msra.mxu0 0.0
      %339 = vmatprep.subr.mxu0 0.0
      %340 = vmatpush1.msra.mxu0 0.0
      %341 = vmatprep.subr.mxu0 0.0
      %342 = vmatpush1.msra.mxu0 0.0
      %343 = vmatprep.subr.mxu0 0.0
      %344 = vmatpush1.msra.mxu0 0.0
      %345 = vmatprep.subr.mxu0 0.0
      %346 = vmatpush1.msra.mxu0 0.0
      %347 = vmatprep.subr.mxu0 0.0
      %348 = vmatpush1.msra.mxu0 0.0
      %349 = vmatprep.subr.mxu0 0.0
      %350 = vmatpush1.msra.mxu0 0.0
      %351 = vmatprep.subr.mxu0 0.0
      %352 = vmatpush1.msra.mxu0 0.0
      %353 = vmatprep.subr.mxu0 0.0
      %354 = vmatpush1.msra.mxu0 0.0
      %355 = vmatprep.subr.mxu0 0.0
      %356 = vmatpush1.msra.mxu0 0.0
      %357 = vmatprep.subr.mxu0 0.0
      %358 = vmatpush1.msra.mxu0 0.0
      %359 = vmatprep.mubr.f32.mxu0 0.0
      %360 = vmatmul.mubr.f32.gmra.mrb[0].mxu0 %v293
      %v361 = vpop.f32.mrb[0].mxu0
      %v362 = vadd.f32 0.0, %v361
      %v363 = vpop.f32.mrb[0].mxu0
      %364 = vdwg.mxu0
      %v365 = vadd.f32 %v286, %v362
      %v366 = vxor.u32 %v365, 2147483648
      %v367 = vmul.f32 %v366, 1.442695
      %v368 = vpow.pop %v367
      %v369 = vadd.f32 %v368, 1.0
      %v370 = vrcp.pop %v369
      %v371 = vmul.f32 1.0, %v370
      %v372 = vtanh.pop %v365
      %v373 = vld [vmem:[#allocation3] sm:$0xff]
      %375 = vrot.lane.b32.xlu0 %v373, 32
      %v376 = vpop.permute.xlu0 %375
      %v378 = vmul.f32 %v371, %v376
      %380 = vrot.lane.b32.xlu0 %v372, 64
      %v381 = vpop.permute.xlu0 %380
      %v383 = vmul.f32 %v371, %v381
      %385 = vrot.lane.b32.xlu0 %v383, 32
      %v386 = vpop.permute.xlu0 %385
      %v388 = vadd.f32 %v378, %v386
      %v389 = vtanh.pop %v388
      %391 = vrot.lane.b32.xlu0 %v389, 64
      %v392 = vpop.permute.xlu0 %391
      %v394 = vmul.f32 %v371, %v392
      %396 = vrot.lane.b32.xlu0 %v394, 32
      %v397 = vpop.permute.xlu0 %396
      %399 = vst.msk [vmem:[#allocation2] sm:$0xff] %vm291, %v397
      %401 = vrot.lane.b32.xlu0 %v388, 96
      %v402 = vpop.permute.xlu0 %401
      %404 = vst.msk [vmem:[#allocation3] sm:$0xff] %vm291, %v402
      %405 = vst.msk [vmem:[%s268] sm:$0xff] %vm291, %v397
      // Predicated region
      $region33: #{bidirectional_rnn.2} parent=27 // pred_check
        %p406 = pneg %p278
      $region34: #{bidirectional_rnn.2} parent=27 // pred_check_branch
        %408 = sbr.rel (%p406) target = $region36
      $region35: #{bidirectional_rnn.2} parent=27 // pred_region
        %409 = vst.msk [vmem:[%s273] sm:$0xff] %vm291, %v402
      $region36: #{bidirectional_rnn.2} parent=27 // pred_fallthru
        _
      %v410 = vld [vmem:[#allocation2] sm:$0xff]
      %s411 = scalar_lea.vmem %s253, 8
      %v412 = vld [vmem:[%s411] sm:$0xff]
      %v413 = vld [vmem:[%s259] sm:$0xff]
      %v414 = vld [vmem:[%s259 + $0x8] sm:$0xff]
      %v415 = vld [vmem:[%s259 + $0x10] sm:$0xff]
      %v416 = vld [vmem:[%s259 + $0x18] sm:$0xff]
      %v418 = vsel %vm291, %v410, 0
      %420 = vmatprep.subr.mxu0 0.0
      %421 = vmatpush1.msra.mxu0 %v413
      %422 = vmatprep.subr.mxu0 0.0
      %423 = vmatpush1.msra.mxu0 %v414
      %424 = vmatprep.subr.mxu0 0.0
      %425 = vmatpush1.msra.mxu0 %v415
      %426 = vmatprep.subr.mxu0 0.0
      %427 = vmatpush1.msra.mxu0 %v416
      %428 = vmatprep.subr.mxu0 0.0
      %429 = vmatpush1.msra.mxu0 0.0
      %430 = vmatprep.subr.mxu0 0.0
      %431 = vmatpush1.msra.mxu0 0.0
      %432 = vmatprep.subr.mxu0 0.0
      %433 = vmatpush1.msra.mxu0 0.0
      %434 = vmatprep.subr.mxu0 0.0
      %435 = vmatpush1.msra.mxu0 0.0
      %436 = vmatprep.subr.mxu0 0.0
      %437 = vmatpush1.msra.mxu0 0.0
      %438 = vmatprep.subr.mxu0 0.0
      %439 = vmatpush1.msra.mxu0 0.0
      %440 = vmatprep.subr.mxu0 0.0
      %441 = vmatpush1.msra.mxu0 0.0
      %442 = vmatprep.subr.mxu0 0.0
      %443 = vmatpush1.msra.mxu0 0.0
      %444 = vmatprep.subr.mxu0 0.0
      %445 = vmatpush1.msra.mxu0 0.0
      %446 = vmatprep.subr.mxu0 0.0
      %447 = vmatpush1.msra.mxu0 0.0
      %448 = vmatprep.subr.mxu0 0.0
      %449 = vmatpush1.msra.mxu0 0.0
      %450 = vmatprep.subr.mxu0 0.0
      %451 = vmatpush1.msra.mxu0 0.0
      %452 = vmatprep.subr.mxu0 0.0
      %453 = vmatpush1.msra.mxu0 0.0
      %454 = vmatprep.subr.mxu0 0.0
      %455 = vmatpush1.msra.mxu0 0.0
      %456 = vmatprep.subr.mxu0 0.0
      %457 = vmatpush1.msra.mxu0 0.0
      %458 = vmatprep.subr.mxu0 0.0
      %459 = vmatpush1.msra.mxu0 0.0
      %460 = vmatprep.subr.mxu0 0.0
      %461 = vmatpush1.msra.mxu0 0.0
      %462 = vmatprep.subr.mxu0 0.0
      %463 = vmatpush1.msra.mxu0 0.0
      %464 = vmatprep.subr.mxu0 0.0
      %465 = vmatpush1.msra.mxu0 0.0
      %466 = vmatprep.subr.mxu0 0.0
      %467 = vmatpush1.msra.mxu0 0.0
      %468 = vmatprep.subr.mxu0 0.0
      %469 = vmatpush1.msra.mxu0 0.0
      %470 = vmatprep.subr.mxu0 0.0
      %471 = vmatpush1.msra.mxu0 0.0
      %472 = vmatprep.subr.mxu0 0.0
      %473 = vmatpush1.msra.mxu0 0.0
      %474 = vmatprep.subr.mxu0 0.0
      %475 = vmatpush1.msra.mxu0 0.0
      %476 = vmatprep.subr.mxu0 0.0
      %477 = vmatpush1.msra.mxu0 0.0
      %478 = vmatprep.subr.mxu0 0.0
      %479 = vmatpush1.msra.mxu0 0.0
      %480 = vmatprep.subr.mxu0 0.0
      %481 = vmatpush1.msra.mxu0 0.0
      %482 = vmatprep.subr.mxu0 0.0
      %483 = vmatpush1.msra.mxu0 0.0
      %484 = vmatprep.mubr.f32.mxu0 0.0
      %485 = vmatmul.mubr.f32.gmra.mrb[0].mxu0 %v418
      %v486 = vpop.f32.mrb[0].mxu0
      %v487 = vadd.f32 0.0, %v486
      %v488 = vpop.f32.mrb[0].mxu0
      %489 = vdwg.mxu0
      %v490 = vadd.f32 %v412, %v487
      %v491 = vxor.u32 %v490, 2147483648
      %v492 = vmul.f32 %v491, 1.442695
      %v493 = vpow.pop %v492
      %v494 = vadd.f32 %v493, 1.0
      %v495 = vrcp.pop %v494
      %v496 = vmul.f32 1.0, %v495
      %v497 = vtanh.pop %v490
      %v498 = vld [vmem:[#allocation3] sm:$0xff]
      %500 = vrot.lane.b32.xlu0 %v498, 32
      %v501 = vpop.permute.xlu0 %500
      %v503 = vmul.f32 %v496, %v501
      %505 = vrot.lane.b32.xlu0 %v497, 64
      %v506 = vpop.permute.xlu0 %505
      %v508 = vmul.f32 %v496, %v506
      %510 = vrot.lane.b32.xlu0 %v508, 32
      %v511 = vpop.permute.xlu0 %510
      %v513 = vadd.f32 %v503, %v511
      %v514 = vtanh.pop %v513
      %516 = vrot.lane.b32.xlu0 %v514, 64
      %v517 = vpop.permute.xlu0 %516
      %v519 = vmul.f32 %v496, %v517
      %521 = vrot.lane.b32.xlu0 %v519, 32
      %v522 = vpop.permute.xlu0 %521
      %524 = vst.msk [vmem:[#allocation2] sm:$0xff] %vm291, %v522
      %526 = vrot.lane.b32.xlu0 %v513, 96
      %v527 = vpop.permute.xlu0 %526
      %529 = vst.msk [vmem:[#allocation3] sm:$0xff] %vm291, %v527
      %s530 = scalar_lea.vmem %s268, 8
      %531 = vst.msk [vmem:[%s530] sm:$0xff] %vm291, %v522
      %v532 = vld [vmem:[#allocation2] sm:$0xff]
      %s533 = scalar_lea.vmem %s253, 16
      %v534 = vld [vmem:[%s533] sm:$0xff]
      %v535 = vld [vmem:[%s259] sm:$0xff]
      %v536 = vld [vmem:[%s259 + $0x8] sm:$0xff]
      %v537 = vld [vmem:[%s259 + $0x10] sm:$0xff]
      %v538 = vld [vmem:[%s259 + $0x18] sm:$0xff]
      %v540 = vsel %vm291, %v532, 0
      %542 = vmatprep.subr.mxu0 0.0
      %543 = vmatpush1.msra.mxu0 %v535
      %544 = vmatprep.subr.mxu0 0.0
      %545 = vmatpush1.msra.mxu0 %v536
      %546 = vmatprep.subr.mxu0 0.0
      %547 = vmatpush1.msra.mxu0 %v537
      %548 = vmatprep.subr.mxu0 0.0
      %549 = vmatpush1.msra.mxu0 %v538
      %550 = vmatprep.subr.mxu0 0.0
      %551 = vmatpush1.msra.mxu0 0.0
      %552 = vmatprep.subr.mxu0 0.0
      %553 = vmatpush1.msra.mxu0 0.0
      %554 = vmatprep.subr.mxu0 0.0
      %555 = vmatpush1.msra.mxu0 0.0
      %556 = vmatprep.subr.mxu0 0.0
      %557 = vmatpush1.msra.mxu0 0.0
      %558 = vmatprep.subr.mxu0 0.0
      %559 = vmatpush1.msra.mxu0 0.0
      %560 = vmatprep.subr.mxu0 0.0
      %561 = vmatpush1.msra.mxu0 0.0
      %562 = vmatprep.subr.mxu0 0.0
      %563 = vmatpush1.msra.mxu0 0.0
      %564 = vmatprep.subr.mxu0 0.0
      %565 = vmatpush1.msra.mxu0 0.0
      %566 = vmatprep.subr.mxu0 0.0
      %567 = vmatpush1.msra.mxu0 0.0
      %568 = vmatprep.subr.mxu0 0.0
      %569 = vmatpush1.msra.mxu0 0.0
      %570 = vmatprep.subr.mxu0 0.0
      %571 = vmatpush1.msra.mxu0 0.0
      %572 = vmatprep.subr.mxu0 0.0
      %573 = vmatpush1.msra.mxu0 0.0
      %574 = vmatprep.subr.mxu0 0.0
      %575 = vmatpush1.msra.mxu0 0.0
      %576 = vmatprep.subr.mxu0 0.0
      %577 = vmatpush1.msra.mxu0 0.0
      %578 = vmatprep.subr.mxu0 0.0
      %579 = vmatpush1.msra.mxu0 0.0
      %580 = vmatprep.subr.mxu0 0.0
      %581 = vmatpush1.msra.mxu0 0.0
      %582 = vmatprep.subr.mxu0 0.0
      %583 = vmatpush1.msra.mxu0 0.0
      %584 = vmatprep.subr.mxu0 0.0
      %585 = vmatpush1.msra.mxu0 0.0
      %586 = vmatprep.subr.mxu0 0.0
      %587 = vmatpush1.msra.mxu0 0.0
      %588 = vmatprep.subr.mxu0 0.0
      %589 = vmatpush1.msra.mxu0 0.0
      %590 = vmatprep.subr.mxu0 0.0
      %591 = vmatpush1.msra.mxu0 0.0
      %592 = vmatprep.subr.mxu0 0.0
      %593 = vmatpush1.msra.mxu0 0.0
      %594 = vmatprep.subr.mxu0 0.0
      %595 = vmatpush1.msra.mxu0 0.0
      %596 = vmatprep.subr.mxu0 0.0
      %597 = vmatpush1.msra.mxu0 0.0
      %598 = vmatprep.subr.mxu0 0.0
      %599 = vmatpush1.msra.mxu0 0.0
      %600 = vmatprep.subr.mxu0 0.0
      %601 = vmatpush1.msra.mxu0 0.0
      %602 = vmatprep.subr.mxu0 0.0
      %603 = vmatpush1.msra.mxu0 0.0
      %604 = vmatprep.subr.mxu0 0.0
      %605 = vmatpush1.msra.mxu0 0.0
      %606 = vmatprep.mubr.f32.mxu0 0.0
      %607 = vmatmul.mubr.f32.gmra.mrb[0].mxu0 %v540
      %v608 = vpop.f32.mrb[0].mxu0
      %v609 = vadd.f32 0.0, %v608
      %v610 = vpop.f32.mrb[0].mxu0
      %611 = vdwg.mxu0
      %v612 = vadd.f32 %v534, %v609
      %v613 = vxor.u32 %v612, 2147483648
      %v614 = vmul.f32 %v613, 1.442695
      %v615 = vpow.pop %v614
      %v616 = vadd.f32 %v615, 1.0
      %v617 = vrcp.pop %v616
      %v618 = vmul.f32 1.0, %v617
      %v619 = vtanh.pop %v612
      %v620 = vld [vmem:[#allocation3] sm:$0xff]
      %622 = vrot.lane.b32.xlu0 %v620, 32
      %v623 = vpop.permute.xlu0 %622
      %v625 = vmul.f32 %v618, %v623
      %627 = vrot.lane.b32.xlu0 %v619, 64
      %v628 = vpop.permute.xlu0 %627
      %v630 = vmul.f32 %v618, %v628
      %632 = vrot.lane.b32.xlu0 %v630, 32
      %v633 = vpop.permute.xlu0 %632
      %v635 = vadd.f32 %v625, %v633
      %v636 = vtanh.pop %v635
      %638 = vrot.lane.b32.xlu0 %v636, 64
      %v639 = vpop.permute.xlu0 %638
      %v641 = vmul.f32 %v618, %v639
      %643 = vrot.lane.b32.xlu0 %v641, 32
      %v644 = vpop.permute.xlu0 %643
      %646 = vst.msk [vmem:[#allocation2] sm:$0xff] %vm291, %v644
      %648 = vrot.lane.b32.xlu0 %v635, 96
      %v649 = vpop.permute.xlu0 %648
      %651 = vst.msk [vmem:[#allocation3] sm:$0xff] %vm291, %v649
      %s652 = scalar_lea.vmem %s268, 16
      %653 = vst.msk [vmem:[%s652] sm:$0xff] %vm291, %v644
      %v654 = vld [vmem:[#allocation2] sm:$0xff]
      %s655 = scalar_lea.vmem %s253, 24
      %v656 = vld [vmem:[%s655] sm:$0xff]
      %v657 = vld [vmem:[%s259] sm:$0xff]
      %v658 = vld [vmem:[%s259 + $0x8] sm:$0xff]
      %v659 = vld [vmem:[%s259 + $0x10] sm:$0xff]
      %v660 = vld [vmem:[%s259 + $0x18] sm:$0xff]
      %v662 = vsel %vm291, %v654, 0
      %664 = vmatprep.subr.mxu0 0.0
      %665 = vmatpush1.msra.mxu0 %v657
      %666 = vmatprep.subr.mxu0 0.0
      %667 = vmatpush1.msra.mxu0 %v658
      %668 = vmatprep.subr.mxu0 0.0
      %669 = vmatpush1.msra.mxu0 %v659
      %670 = vmatprep.subr.mxu0 0.0
      %671 = vmatpush1.msra.mxu0 %v660
      %672 = vmatprep.subr.mxu0 0.0
      %673 = vmatpush1.msra.mxu0 0.0
      %674 = vmatprep.subr.mxu0 0.0
      %675 = vmatpush1.msra.mxu0 0.0
      %676 = vmatprep.subr.mxu0 0.0
      %677 = vmatpush1.msra.mxu0 0.0
      %678 = vmatprep.subr.mxu0 0.0
      %679 = vmatpush1.msra.mxu0 0.0
      %680 = vmatprep.subr.mxu0 0.0
      %681 = vmatpush1.msra.mxu0 0.0
      %682 = vmatprep.subr.mxu0 0.0
      %683 = vmatpush1.msra.mxu0 0.0
      %684 = vmatprep.subr.mxu0 0.0
      %685 = vmatpush1.msra.mxu0 0.0
      %686 = vmatprep.subr.mxu0 0.0
      %687 = vmatpush1.msra.mxu0 0.0
      %688 = vmatprep.subr.mxu0 0.0
      %689 = vmatpush1.msra.mxu0 0.0
      %690 = vmatprep.subr.mxu0 0.0
      %691 = vmatpush1.msra.mxu0 0.0
      %692 = vmatprep.subr.mxu0 0.0
      %693 = vmatpush1.msra.mxu0 0.0
      %694 = vmatprep.subr.mxu0 0.0
      %695 = vmatpush1.msra.mxu0 0.0
      %696 = vmatprep.subr.mxu0 0.0
      %697 = vmatpush1.msra.mxu0 0.0
      %698 = vmatprep.subr.mxu0 0.0
      %699 = vmatpush1.msra.mxu0 0.0
      %700 = vmatprep.subr.mxu0 0.0
      %701 = vmatpush1.msra.mxu0 0.0
      %702 = vmatprep.subr.mxu0 0.0
      %703 = vmatpush1.msra.mxu0 0.0
      %704 = vmatprep.subr.mxu0 0.0
      %705 = vmatpush1.msra.mxu0 0.0
      %706 = vmatprep.subr.mxu0 0.0
      %707 = vmatpush1.msra.mxu0 0.0
      %708 = vmatprep.subr.mxu0 0.0
      %709 = vmatpush1.msra.mxu0 0.0
      %710 = vmatprep.subr.mxu0 0.0
      %711 = vmatpush1.msra.mxu0 0.0
      %712 = vmatprep.subr.mxu0 0.0
      %713 = vmatpush1.msra.mxu0 0.0
      %714 = vmatprep.subr.mxu0 0.0
      %715 = vmatpush1.msra.mxu0 0.0
      %716 = vmatprep.subr.mxu0 0.0
      %717 = vmatpush1.msra.mxu0 0.0
      %718 = vmatprep.subr.mxu0 0.0
      %719 = vmatpush1.msra.mxu0 0.0
      %720 = vmatprep.subr.mxu0 0.0
      %721 = vmatpush1.msra.mxu0 0.0
      %722 = vmatprep.subr.mxu0 0.0
      %723 = vmatpush1.msra.mxu0 0.0
      %724 = vmatprep.subr.mxu0 0.0
      %725 = vmatpush1.msra.mxu0 0.0
      %726 = vmatprep.subr.mxu0 0.0
      %727 = vmatpush1.msra.mxu0 0.0
      %728 = vmatprep.mubr.f32.mxu0 0.0
      %729 = vmatmul.mubr.f32.gmra.mrb[0].mxu0 %v662
      %v730 = vpop.f32.mrb[0].mxu0
      %v731 = vadd.f32 0.0, %v730
      %v732 = vpop.f32.mrb[0].mxu0
      %733 = vdwg.mxu0
      %v734 = vadd.f32 %v656, %v731
      %v735 = vxor.u32 %v734, 2147483648
      %v736 = vmul.f32 %v735, 1.442695
      %v737 = vpow.pop %v736
      %v738 = vadd.f32 %v737, 1.0
      %v739 = vrcp.pop %v738
      %v740 = vmul.f32 1.0, %v739
      %v741 = vtanh.pop %v734
      %v742 = vld [vmem:[#allocation3] sm:$0xff]
      %744 = vrot.lane.b32.xlu0 %v742, 32
      %v745 = vpop.permute.xlu0 %744
      %v747 = vmul.f32 %v740, %v745
      %749 = vrot.lane.b32.xlu0 %v741, 64
      %v750 = vpop.permute.xlu0 %749
      %v752 = vmul.f32 %v740, %v750
      %754 = vrot.lane.b32.xlu0 %v752, 32
      %v755 = vpop.permute.xlu0 %754
      %v757 = vadd.f32 %v747, %v755
      %v758 = vtanh.pop %v757
      %760 = vrot.lane.b32.xlu0 %v758, 64
      %v761 = vpop.permute.xlu0 %760
      %v763 = vmul.f32 %v740, %v761
      %765 = vrot.lane.b32.xlu0 %v763, 32
      %v766 = vpop.permute.xlu0 %765
      %768 = vst.msk [vmem:[#allocation2] sm:$0xff] %vm291, %v766
      %770 = vrot.lane.b32.xlu0 %v757, 96
      %v771 = vpop.permute.xlu0 %770
      %773 = vst.msk [vmem:[#allocation3] sm:$0xff] %vm291, %v771
      %s774 = scalar_lea.vmem %s268, 24
      %775 = vst.msk [vmem:[%s774] sm:$0xff] %vm291, %v766
      %p776 = scmp.eq.s32.totalorder %s21, 1
      // Predicated region
      $region37: #{bidirectional_rnn.2} parent=27 // pred_check
        %p777 = pneg %p776
      $region38: #{bidirectional_rnn.2} parent=27 // pred_check_branch
        %779 = sbr.rel (%p777) target = $region40
      $region39: #{bidirectional_rnn.2} parent=27 // pred_region
        %v780 = vld [vmem:[#allocation3] sm:$0xff]
        %781 = vst.msk [vmem:[%s277] sm:$0xff] %vm291, %v780
      $region40: #{bidirectional_rnn.2} parent=27 // pred_fallthru
        _
      %s782 = smul.u32 4, %s21
      %p783 = scmp.lt.s32.totalorder %s20, 1
      %s784 = scalar_select %p783, %s20, 1
      %p785 = scmp.lt.s32.totalorder %s782, 7
      %s786 = scalar_select %p785, %s782, 7
      %s787 = smul.addr %s784, 8
      %s788 = sadd.s32 %s786, %s787
      %s789 = smul.addr %s788, 8
      %s790 = scalar_lea.vmem %s2, %s789
      %p791 = scmp.lt.s32.totalorder %s20, 1
      %s792 = scalar_select %p791, %s20, 1
      %s793 = smul.addr %s792, 8
      %s794 = scalar_lea.vmem %s3, %s793
      %p795 = scmp.lt.s32.totalorder %s20, 1
      %s796 = scalar_select %p795, %s20, 1
      %s797 = smul.addr %s796, 8
      %s798 = scalar_lea.vmem %s4, %s797
      // Predicated region
      $region41: #{bidirectional_rnn.2} parent=27 // pred_check
        %p799 = pneg %p102
      $region42: #{bidirectional_rnn.2} parent=27 // pred_check_branch
        %801 = sbr.rel (%p799) target = $region44
      $region43: #{bidirectional_rnn.2} parent=27 // pred_region
        %s802 = smul.u32 4, %s21
      $region44: #{bidirectional_rnn.2} parent=27 // pred_fallthru
        _
      // Predicated region
      $region45: #{bidirectional_rnn.2} parent=27 // pred_check
        %p803 = pneg %p128
      $region46: #{bidirectional_rnn.2} parent=27 // pred_check_branch
        %805 = sbr.rel (%p803) target = $region48
      $region47: #{bidirectional_rnn.2} parent=27 // pred_region
        _
      $region48: #{bidirectional_rnn.2} parent=27 // pred_fallthru
        _
      // Predicated region
      $region49: #{bidirectional_rnn.2} parent=27 // pred_check
        %p806 = pneg %p154
      $region50: #{bidirectional_rnn.2} parent=27 // pred_check_branch
        %808 = sbr.rel (%p806) target = $region52
      $region51: #{bidirectional_rnn.2} parent=27 // pred_region
        _
      $region52: #{bidirectional_rnn.2} parent=27 // pred_fallthru
        _
    $region28: #{bidirectional_rnn.2} parent=5 // pred_fallthru
      _
    %p809 = scmp.le.s32.totalorder 2, %s11
    // Predicated region
    $region53: #{bidirectional_rnn.2} parent=5 // pred_check
      %p810 = pneg %p809
    $region54: #{bidirectional_rnn.2} parent=5 // pred_check_branch
      %812 = sbr.rel (%p810) target = $region56
    $region55: #{bidirectional_rnn.2} parent=5 // pred_region
      %s813 = ssub.s32 %s11, 2
      // Predicated region
      $region57: #{bidirectional_rnn.2} parent=55 // pred_check
        %p814 = pneg %p108
      $region58: #{bidirectional_rnn.2} parent=55 // pred_check_branch
        %816 = sbr.rel (%p814) target = $region60
      $region59: #{bidirectional_rnn.2} parent=55 // pred_region
        %s817 = smul.u32 4, %s23
        %p818 = scmp.lt.s32.totalorder %s22, 1
        %s819 = scalar_select %p818, %s22, 1
        %p820 = scmp.lt.s32.totalorder %s817, 7
        %s821 = scalar_select %p820, %s817, 7
        %s822 = smul.addr %s819, 8
        %s823 = sadd.s32 %s821, %s822
        %s824 = smul.addr %s823, 8
        %s825 = scalar_lea.vmem %s2, %s824
      $region60: #{bidirectional_rnn.2} parent=55 // pred_fallthru
        _
      // Predicated region
      $region61: #{bidirectional_rnn.2} parent=55 // pred_check
        %p826 = pneg %p134
      $region62: #{bidirectional_rnn.2} parent=55 // pred_check_branch
        %828 = sbr.rel (%p826) target = $region64
      $region63: #{bidirectional_rnn.2} parent=55 // pred_region
        %p829 = scmp.lt.s32.totalorder %s22, 1
        %s830 = scalar_select %p829, %s22, 1
        %s831 = smul.addr %s830, 8
        %s832 = scalar_lea.vmem %s3, %s831
      $region64: #{bidirectional_rnn.2} parent=55 // pred_fallthru
        _
      // Predicated region
      $region65: #{bidirectional_rnn.2} parent=55 // pred_check
        %p833 = pneg %p160
      $region66: #{bidirectional_rnn.2} parent=55 // pred_check_branch
        %835 = sbr.rel (%p833) target = $region68
      $region67: #{bidirectional_rnn.2} parent=55 // pred_region
        %p836 = scmp.lt.s32.totalorder %s22, 1
        %s837 = scalar_select %p836, %s22, 1
        %s838 = smul.addr %s837, 8
        %s839 = scalar_lea.vmem %s4, %s838
      $region68: #{bidirectional_rnn.2} parent=55 // pred_fallthru
        _
    $region56: #{bidirectional_rnn.2} parent=5 // pred_fallthru
      _
  $region6: #{bidirectional_rnn.2} parent=0 // loop_footer
    %s15 = sadd.s32 1, %s11
  $region7: #{bidirectional_rnn.2} parent=0 // loop_footer_branch
    %10 = sbr.rel target = $region3
  $region8: #{bidirectional_rnn.2} parent=0 // loop_exit
    _

</llo_original>
